<compile_context>
chip_gen: v7x
topology: tpu7x:2x2x1
jax: 0.10.0
libtpu: 0.0.40
codegen_flags: <defaults>
</compile_context>

<pallas_src>
import math
import functools

import jax
import jax.numpy as jnp
from jax import lax
from jax.experimental import pallas as pl
from jax.experimental.pallas import tpu as pltpu


def _round_up(x: int, m: int) -> int:
    return ((x + m - 1) // m) * m


def _sdp_kernel(q_ref, k_ref, o_ref, *, inv_sqrt_d, scale_q):
    # q_ref: (gb, tq, d), k_ref: (gb, tk, d), o_ref: (gb, tq, tk)
    q = q_ref[...]
    if scale_q:
        # f32 path: scale Q (N_q*d elements) instead of the scores (N_q*N_k).
        q = q * inv_sqrt_d
    k = k_ref[...]
    # Batched Q @ K^T without materializing a transpose: contract last dims,
    # batch over the group dim. Accumulate in f32 on the MXU.
    scores = lax.dot_general(
        q, k,
        dimension_numbers=(((2,), (2,)), ((0,), (0,))),
        preferred_element_type=jnp.float32,
    )
    if not scale_q:
        scores = scores * inv_sqrt_d
    o_ref[...] = scores.astype(o_ref.dtype)


def scaled_dot_product_similarity(queries, keys, d, *, tq=512, tk=512):
    """Pallas equivalent of ScaledDotProductSimilarity(d).forward(queries, keys)."""
    q_lead = queries.shape[:-2]
    k_lead = keys.shape[:-2]
    assert q_lead == k_lead, "leading (batch/head) dims must match"
    assert queries.shape[-1] == keys.shape[-1] == d

    n_q = queries.shape[-2]
    n_k = keys.shape[-2]
    g = int(math.prod(q_lead)) if q_lead else 1

    q3 = queries.reshape(g, n_q, d)
    k3 = keys.reshape(g, n_k, d)

    # ---- tile sizing -------------------------------------------------------
    # tq: multiple of 8 (sublane); tk: multiple of 128 (lane-dense output).
    tq = max(8, min(tq, _round_up(n_q, 8)))
    tk = max(128, min(tk, _round_up(n_k, 128)))
    tq = _round_up(tq, 8)
    tk = _round_up(tk, 128)

    itemsize = jnp.dtype(queries.dtype).itemsize
    per_group_bytes = (tq * d + tk * d + tq * tk) * itemsize
    # Batch groups per grid step up to ~8 MiB of live tile data per buffer.
    budget_bytes = 8 * 1024 * 1024
    gb = max(1, min(g, budget_bytes // max(per_group_bytes, 1)))

    n_q_p = _round_up(n_q, tq)
    n_k_p = _round_up(n_k, tk)
    g_p = _round_up(g, gb)

    if g_p != g or n_q_p != n_q:
        q3 = jnp.pad(q3, ((0, g_p - g), (0, n_q_p - n_q), (0, 0)))
    if g_p != g or n_k_p != n_k:
        k3 = jnp.pad(k3, ((0, g_p - g), (0, n_k_p - n_k), (0, 0)))

    # Double-buffered pipeline footprint + margin, clamped for v7x's 64 MiB VMEM.
    step_bytes = gb * per_group_bytes
    vmem_limit = int(min(64 * 1024 * 1024,
                         max(32 * 1024 * 1024, 2 * step_bytes + 4 * 1024 * 1024)))

    kernel = functools.partial(
        _sdp_kernel,
        inv_sqrt_d=1.0 / math.sqrt(d),
        scale_q=bool(queries.dtype == jnp.float32),
    )

    grid = (g_p // gb, n_q_p // tq, n_k_p // tk)

    out_p = pl.pallas_call(
        kernel,
        out_shape=jax.ShapeDtypeStruct((g_p, n_q_p, n_k_p), queries.dtype),
        grid_spec=pltpu.PrefetchScalarGridSpec(
            num_scalar_prefetch=0,
            grid=grid,
            in_specs=[
                pl.BlockSpec((gb, tq, d), lambda i, qi, ki: (i, qi, 0)),
                pl.BlockSpec((gb, tk, d), lambda i, qi, ki: (i, ki, 0)),
            ],
            out_specs=pl.BlockSpec((gb, tq, tk), lambda i, qi, ki: (i, qi, ki)),
        ),
        compiler_params=pltpu.CompilerParams(
            # No reduction axis (d is fully inside each block) -> all parallel;
            # lets megacore (v7x: 2 TCs) shard the grid.
            dimension_semantics=("parallel", "parallel", "parallel"),
            vmem_limit_bytes=vmem_limit,
        ),
    )(q3, k3)

    out = out_p[:g, :n_q, :n_k]
    return out.reshape(*q_lead, n_q, n_k)


if __name__ == "__main__":
    # Small shapes consistent with the module: batch=2, heads=2, seq=8, d=32.
    B, H, N_Q, N_K, D = 2, 2, 8, 8, 32

    key = jax.random.PRNGKey(0)
    kq, kk = jax.random.split(key)
    queries = jax.random.normal(kq, (B, H, N_Q, D), dtype=jnp.float32)
    keys = jax.random.normal(kk, (B, H, N_K, D), dtype=jnp.float32)

    out = scaled_dot_product_similarity(queries, keys, D)
    out = jax.block_until_ready(out)

    ref = jnp.matmul(queries, jnp.swapaxes(keys, -1, -2)) / math.sqrt(D)
    assert out.shape == (B, H, N_Q, N_K)
    assert jnp.allclose(out, ref, atol=2e-5, rtol=2e-5), "4D case mismatch"

    # Also exercise the no-leading-dims path (plain N_q x d / N_k x d).
    q2 = jax.random.normal(kq, (N_Q, D), dtype=jnp.float32)
    k2 = jax.random.normal(kk, (N_K, D), dtype=jnp.float32)
    out2 = jax.block_until_ready(scaled_dot_product_similarity(q2, k2, D))
    ref2 = (q2 @ k2.T) / math.sqrt(D)
    assert out2.shape == (N_Q, N_K)
    assert jnp.allclose(out2, ref2, atol=2e-5, rtol=2e-5), "2D case mismatch"

    print("KERNEL_OK")
</pallas_src>

<mosaic_0001>
module attributes {stable_mosaic.version = 11 : i64} {
  func.func @_sdp_kernel(%arg0: i32, %arg1: i32, %arg2: i32, %arg3: memref<4x8x32xf32, #tpu.memory_space<vmem>>, %arg4: memref<4x128x32xf32, #tpu.memory_space<vmem>>, %arg5: memref<4x8x128xf32, #tpu.memory_space<vmem>>) attributes {dimension_semantics = [#tpu.dimension_semantics<parallel>, #tpu.dimension_semantics<parallel>, #tpu.dimension_semantics<parallel>], iteration_bounds = array<i64: 1, 1, 1>, scalar_prefetch = 0 : i64, scratch_operands = 0 : i64, tpu.core_type = #tpu.core_type<tc>, window_params = [{transform_indices = @transform_0, window_bounds = array<i64: 4, 8, 32>}, {transform_indices = @transform_1, window_bounds = array<i64: 4, 128, 32>}, {transform_indices = @transform_2, window_bounds = array<i64: 4, 8, 128>}]} {
    %c0 = arith.constant 0 : index
    %c0_0 = arith.constant 0 : index
    %c0_1 = arith.constant 0 : index
    %0 = vector.load %arg3[%c0, %c0_0, %c0_1] : memref<4x8x32xf32, #tpu.memory_space<vmem>>, vector<4x8x32xf32>
    %cst = arith.constant 0.176776692 : f32
    %1 = vector.broadcast %cst : f32 to vector<4x8x32xf32>
    %2 = arith.mulf %0, %1 : vector<4x8x32xf32>
    %c0_2 = arith.constant 0 : index
    %c0_3 = arith.constant 0 : index
    %c0_4 = arith.constant 0 : index
    %3 = vector.load %arg4[%c0_2, %c0_3, %c0_4] : memref<4x128x32xf32, #tpu.memory_space<vmem>>, vector<4x128x32xf32>
    %cst_5 = arith.constant dense<0.000000e+00> : vector<4x8x128xf32>
    %4 = tpu.matmul %2, %3, %cst_5 {dimension_numbers = #tpu.dot_dimension_numbers<[2], [2], [1], [1], [0, 0, 0, 1, 1, 1], [0], [0]>} : vector<4x8x32xf32>, vector<4x128x32xf32>, vector<4x8x128xf32> -> vector<4x8x128xf32>
    %c0_6 = arith.constant 0 : index
    %c0_7 = arith.constant 0 : index
    %c0_8 = arith.constant 0 : index
    %5 = vector.load %arg5[%c0_6, %c0_7, %c0_8] : memref<4x8x128xf32, #tpu.memory_space<vmem>>, vector<4x8x128xf32>
    tpu.vector_store %arg5[%c0_6, %c0_7, %c0_8], %4 {strides = array<i32>} : memref<4x8x128xf32, #tpu.memory_space<vmem>>, vector<4x8x128xf32>,
    return
  }
  func.func @transform_0(%arg0: i32, %arg1: i32, %arg2: i32) -> (i32, i32, i32) {
    %c0_i32 = arith.constant 0 : i32
    %c0_i32_0 = arith.constant 0 : i32
    return %arg0, %arg1, %c0_i32 : i32, i32, i32
  }
  func.func @transform_1(%arg0: i32, %arg1: i32, %arg2: i32) -> (i32, i32, i32) {
    %c0_i32 = arith.constant 0 : i32
    %c0_i32_0 = arith.constant 0 : i32
    return %arg0, %arg2, %c0_i32 : i32, i32, i32
  }
  func.func @transform_2(%arg0: i32, %arg1: i32, %arg2: i32) -> (i32, i32, i32) {
    %c0_i32 = arith.constant 0 : i32
    return %arg0, %arg1, %arg2 : i32, i32, i32
  }
}

</mosaic_0001>

<llo_original>
// kernel: tpu_custom_call.1
$region0: #{tpu_custom_call.1}
  #allocation0 [shape = 'u32[]', space=smem, size = 0x4, offset = 0x4, fixed_abs, tag = 'smem constant byte address 0x4 - core index']
  #allocation1 [shape = 'u32[144,128]{1,0:T(1,128)}', space=vmem, size = 0x12000, scoped, tag = 'internal scratch']
  %s0 = inlined_call_operand.vmem [shape: f32[4,8,32], index: 0, kind: input, shape index: {}]
  %s1 = inlined_call_operand.vmem [shape: f32[4,128,32], index: 1, kind: input, shape index: {}]
  %s2 = inlined_call_operand.hbm [shape: f32[4,8,128], index: 2, kind: output, shape index: {}]
  %s3 = sld [smem:[#allocation0]]
  $region18: #{tpu_custom_call.1} parent=0
    _
  %s5 = ssub.s32 1, %s3
  %s6 = scalar_select 0, %s5, %s3
  $region1: #{tpu_custom_call.1} parent=0
    #allocation2 [shape = 'u8[16384]{0}', space=vmem, size = 0x4000, scoped, tag = 'output window, operand 0, single buffered']
    #allocation3 [shape = 's32[1]{0}', space=sflag, size = 0x4, scoped, tag = 'scoped memory for tpu_custom_call.1']
    %7 = vsyncpa [#allocation3], 0
    // Predicated region
    $region2: #{tpu_custom_call.1} parent=1 // pred_check
      _
    $region3: #{tpu_custom_call.1} parent=1 // pred_check_branch
      %9 = sbr.rel (0) target = $region5
    $region4: #{tpu_custom_call.1} parent=1 // pred_region
      _
    $region5: #{tpu_custom_call.1} parent=1 // pred_fallthru
      _
    // Predicated region
    $region6: #{tpu_custom_call.1} parent=1 // pred_check
      _
    $region7: #{tpu_custom_call.1} parent=1 // pred_check_branch
      %11 = sbr.rel (0) target = $region9
    $region8: #{tpu_custom_call.1} parent=1 // pred_region
      _
    $region9: #{tpu_custom_call.1} parent=1 // pred_fallthru
      _
    %v12 = vld [vmem:[%s0] sm:$0xff]
    %v13 = vld [vmem:[%s0 + $0x8] sm:$0xff]
    %v14 = vld [vmem:[%s0 + $0x10] sm:$0xff]
    %v15 = vld [vmem:[%s0 + $0x18] sm:$0xff]
    %v16 = vmul.f32 %v12, 0.17677669
    %v17 = vmul.f32 %v13, 0.17677669
    %v18 = vmul.f32 %v14, 0.17677669
    %v19 = vmul.f32 %v15, 0.17677669
    %v20 = vld [vmem:[%s1] sm:$0xff]
    %v21 = vld [vmem:[%s1 + $0x8] sm:$0xff]
    %v22 = vld [vmem:[%s1 + $0x10] sm:$0xff]
    %v23 = vld [vmem:[%s1 + $0x18] sm:$0xff]
    %v24 = vld [vmem:[%s1 + $0x20] sm:$0xff]
    %v25 = vld [vmem:[%s1 + $0x28] sm:$0xff]
    %v26 = vld [vmem:[%s1 + $0x30] sm:$0xff]
    %v27 = vld [vmem:[%s1 + $0x38] sm:$0xff]
    %v28 = vld [vmem:[%s1 + $0x40] sm:$0xff]
    %v29 = vld [vmem:[%s1 + $0x48] sm:$0xff]
    %v30 = vld [vmem:[%s1 + $0x50] sm:$0xff]
    %v31 = vld [vmem:[%s1 + $0x58] sm:$0xff]
    %v32 = vld [vmem:[%s1 + $0x60] sm:$0xff]
    %v33 = vld [vmem:[%s1 + $0x68] sm:$0xff]
    %v34 = vld [vmem:[%s1 + $0x70] sm:$0xff]
    %v35 = vld [vmem:[%s1 + $0x78] sm:$0xff]
    %v36 = vld [vmem:[%s1 + $0x80] sm:$0xff]
    %v37 = vld [vmem:[%s1 + $0x88] sm:$0xff]
    %v38 = vld [vmem:[%s1 + $0x90] sm:$0xff]
    %v39 = vld [vmem:[%s1 + $0x98] sm:$0xff]
    %v40 = vld [vmem:[%s1 + $0xa0] sm:$0xff]
    %v41 = vld [vmem:[%s1 + $0xa8] sm:$0xff]
    %v42 = vld [vmem:[%s1 + $0xb0] sm:$0xff]
    %v43 = vld [vmem:[%s1 + $0xb8] sm:$0xff]
    %v44 = vld [vmem:[%s1 + $0xc0] sm:$0xff]
    %v45 = vld [vmem:[%s1 + $0xc8] sm:$0xff]
    %v46 = vld [vmem:[%s1 + $0xd0] sm:$0xff]
    %v47 = vld [vmem:[%s1 + $0xd8] sm:$0xff]
    %v48 = vld [vmem:[%s1 + $0xe0] sm:$0xff]
    %v49 = vld [vmem:[%s1 + $0xe8] sm:$0xff]
    %v50 = vld [vmem:[%s1 + $0xf0] sm:$0xff]
    %v51 = vld [vmem:[%s1 + $0xf8] sm:$0xff]
    %v52 = vld [vmem:[%s1 + $0x100] sm:$0xff]
    %v53 = vld [vmem:[%s1 + $0x108] sm:$0xff]
    %v54 = vld [vmem:[%s1 + $0x110] sm:$0xff]
    %v55 = vld [vmem:[%s1 + $0x118] sm:$0xff]
    %v56 = vld [vmem:[%s1 + $0x120] sm:$0xff]
    %v57 = vld [vmem:[%s1 + $0x128] sm:$0xff]
    %v58 = vld [vmem:[%s1 + $0x130] sm:$0xff]
    %v59 = vld [vmem:[%s1 + $0x138] sm:$0xff]
    %v60 = vld [vmem:[%s1 + $0x140] sm:$0xff]
    %v61 = vld [vmem:[%s1 + $0x148] sm:$0xff]
    %v62 = vld [vmem:[%s1 + $0x150] sm:$0xff]
    %v63 = vld [vmem:[%s1 + $0x158] sm:$0xff]
    %v64 = vld [vmem:[%s1 + $0x160] sm:$0xff]
    %v65 = vld [vmem:[%s1 + $0x168] sm:$0xff]
    %v66 = vld [vmem:[%s1 + $0x170] sm:$0xff]
    %v67 = vld [vmem:[%s1 + $0x178] sm:$0xff]
    %v68 = vld [vmem:[%s1 + $0x180] sm:$0xff]
    %v69 = vld [vmem:[%s1 + $0x188] sm:$0xff]
    %v70 = vld [vmem:[%s1 + $0x190] sm:$0xff]
    %v71 = vld [vmem:[%s1 + $0x198] sm:$0xff]
    %v72 = vld [vmem:[%s1 + $0x1a0] sm:$0xff]
    %v73 = vld [vmem:[%s1 + $0x1a8] sm:$0xff]
    %v74 = vld [vmem:[%s1 + $0x1b0] sm:$0xff]
    %v75 = vld [vmem:[%s1 + $0x1b8] sm:$0xff]
    %v76 = vld [vmem:[%s1 + $0x1c0] sm:$0xff]
    %v77 = vld [vmem:[%s1 + $0x1c8] sm:$0xff]
    %v78 = vld [vmem:[%s1 + $0x1d0] sm:$0xff]
    %v79 = vld [vmem:[%s1 + $0x1d8] sm:$0xff]
    %v80 = vld [vmem:[%s1 + $0x1e0] sm:$0xff]
    %v81 = vld [vmem:[%s1 + $0x1e8] sm:$0xff]
    %v82 = vld [vmem:[%s1 + $0x1f0] sm:$0xff]
    %v83 = vld [vmem:[%s1 + $0x1f8] sm:$0xff]
    %vm84 = vcmask 261120
    %v86 = vsel %vm84, %v16, 0
    %v89 = vsel %vm84, %v20, 0
    %v92 = vsel %vm84, %v21, 0
    %v95 = vsel %vm84, %v22, 0
    %v98 = vsel %vm84, %v23, 0
    %v101 = vsel %vm84, %v24, 0
    %v104 = vsel %vm84, %v25, 0
    %v107 = vsel %vm84, %v26, 0
    %v110 = vsel %vm84, %v27, 0
    %v113 = vsel %vm84, %v28, 0
    %v116 = vsel %vm84, %v29, 0
    %v119 = vsel %vm84, %v30, 0
    %v122 = vsel %vm84, %v31, 0
    %v125 = vsel %vm84, %v32, 0
    %v128 = vsel %vm84, %v33, 0
    %v131 = vsel %vm84, %v34, 0
    %v134 = vsel %vm84, %v35, 0
    %136 = vmatprep.subr.mxu0 0.0
    %137 = vmatpush1.xpose.msra.mxu0 %v89
    %138 = vmatprep.subr.mxu0 0.0
    %139 = vmatpush1.xpose.msra.mxu0 %v92
    %140 = vmatprep.subr.mxu0 0.0
    %141 = vmatpush1.xpose.msra.mxu0 %v95
    %142 = vmatprep.subr.mxu0 0.0
    %143 = vmatpush1.xpose.msra.mxu0 %v98
    %144 = vmatprep.subr.mxu0 0.0
    %145 = vmatpush1.xpose.msra.mxu0 %v101
    %146 = vmatprep.subr.mxu0 0.0
    %147 = vmatpush1.xpose.msra.mxu0 %v104
    %148 = vmatprep.subr.mxu0 0.0
    %149 = vmatpush1.xpose.msra.mxu0 %v107
    %150 = vmatprep.subr.mxu0 0.0
    %151 = vmatpush1.xpose.msra.mxu0 %v110
    %152 = vmatprep.subr.mxu0 0.0
    %153 = vmatpush1.xpose.msra.mxu0 %v113
    %154 = vmatprep.subr.mxu0 0.0
    %155 = vmatpush1.xpose.msra.mxu0 %v116
    %156 = vmatprep.subr.mxu0 0.0
    %157 = vmatpush1.xpose.msra.mxu0 %v119
    %158 = vmatprep.subr.mxu0 0.0
    %159 = vmatpush1.xpose.msra.mxu0 %v122
    %160 = vmatprep.subr.mxu0 0.0
    %161 = vmatpush1.xpose.msra.mxu0 %v125
    %162 = vmatprep.subr.mxu0 0.0
    %163 = vmatpush1.xpose.msra.mxu0 %v128
    %164 = vmatprep.subr.mxu0 0.0
    %165 = vmatpush1.xpose.msra.mxu0 %v131
    %166 = vmatprep.subr.mxu0 0.0
    %167 = vmatpush1.xpose.msra.mxu0 %v134
    %168 = vmatprep.subr.mxu0 0.0
    %169 = vmatpush1.xpose.msra.mxu0 0.0
    %170 = vmatprep.subr.mxu0 0.0
    %171 = vmatpush1.xpose.msra.mxu0 0.0
    %172 = vmatprep.subr.mxu0 0.0
    %173 = vmatpush1.xpose.msra.mxu0 0.0
    %174 = vmatprep.subr.mxu0 0.0
    %175 = vmatpush1.xpose.msra.mxu0 0.0
    %176 = vmatprep.subr.mxu0 0.0
    %177 = vmatpush1.xpose.msra.mxu0 0.0
    %178 = vmatprep.subr.mxu0 0.0
    %179 = vmatpush1.xpose.msra.mxu0 0.0
    %180 = vmatprep.subr.mxu0 0.0
    %181 = vmatpush1.xpose.msra.mxu0 0.0
    %182 = vmatprep.subr.mxu0 0.0
    %183 = vmatpush1.xpose.msra.mxu0 0.0
    %184 = vmatprep.subr.mxu0 0.0
    %185 = vmatpush1.xpose.msra.mxu0 0.0
    %186 = vmatprep.subr.mxu0 0.0
    %187 = vmatpush1.xpose.msra.mxu0 0.0
    %188 = vmatprep.subr.mxu0 0.0
    %189 = vmatpush1.xpose.msra.mxu0 0.0
    %190 = vmatprep.subr.mxu0 0.0
    %191 = vmatpush1.xpose.msra.mxu0 0.0
    %192 = vmatprep.subr.mxu0 0.0
    %193 = vmatpush1.xpose.msra.mxu0 0.0
    %194 = vmatprep.subr.mxu0 0.0
    %195 = vmatpush1.xpose.msra.mxu0 0.0
    %196 = vmatprep.subr.mxu0 0.0
    %197 = vmatpush1.xpose.msra.mxu0 0.0
    %198 = vmatprep.subr.mxu0 0.0
    %199 = vmatpush1.xpose.msra.mxu0 0.0
    %200 = vmatprep.mubr.f32.mxu0 0.0
    %201 = vmatmul.mubr.f32.gmra.mrb[0].mxu0 %v86
    %v202 = vpop.f32.mrb[0].mxu0
    %v203 = vadd.f32 0.0, %v202
    %v204 = vpop.f32.mrb[0].mxu0
    %205 = vdwg.mxu0
    %v207 = vsel %vm84, %v17, 0
    %v210 = vsel %vm84, %v36, 0
    %v213 = vsel %vm84, %v37, 0
    %v216 = vsel %vm84, %v38, 0
    %v219 = vsel %vm84, %v39, 0
    %v222 = vsel %vm84, %v40, 0
    %v225 = vsel %vm84, %v41, 0
    %v228 = vsel %vm84, %v42, 0
    %v231 = vsel %vm84, %v43, 0
    %v234 = vsel %vm84, %v44, 0
    %v237 = vsel %vm84, %v45, 0
    %v240 = vsel %vm84, %v46, 0
    %v243 = vsel %vm84, %v47, 0
    %v246 = vsel %vm84, %v48, 0
    %v249 = vsel %vm84, %v49, 0
    %v252 = vsel %vm84, %v50, 0
    %v255 = vsel %vm84, %v51, 0
    %257 = vmatprep.subr.mxu0 0.0
    %258 = vmatpush1.xpose.msra.mxu0 %v210
    %259 = vmatprep.subr.mxu0 0.0
    %260 = vmatpush1.xpose.msra.mxu0 %v213
    %261 = vmatprep.subr.mxu0 0.0
    %262 = vmatpush1.xpose.msra.mxu0 %v216
    %263 = vmatprep.subr.mxu0 0.0
    %264 = vmatpush1.xpose.msra.mxu0 %v219
    %265 = vmatprep.subr.mxu0 0.0
    %266 = vmatpush1.xpose.msra.mxu0 %v222
    %267 = vmatprep.subr.mxu0 0.0
    %268 = vmatpush1.xpose.msra.mxu0 %v225
    %269 = vmatprep.subr.mxu0 0.0
    %270 = vmatpush1.xpose.msra.mxu0 %v228
    %271 = vmatprep.subr.mxu0 0.0
    %272 = vmatpush1.xpose.msra.mxu0 %v231
    %273 = vmatprep.subr.mxu0 0.0
    %274 = vmatpush1.xpose.msra.mxu0 %v234
    %275 = vmatprep.subr.mxu0 0.0
    %276 = vmatpush1.xpose.msra.mxu0 %v237
    %277 = vmatprep.subr.mxu0 0.0
    %278 = vmatpush1.xpose.msra.mxu0 %v240
    %279 = vmatprep.subr.mxu0 0.0
    %280 = vmatpush1.xpose.msra.mxu0 %v243
    %281 = vmatprep.subr.mxu0 0.0
    %282 = vmatpush1.xpose.msra.mxu0 %v246
    %283 = vmatprep.subr.mxu0 0.0
    %284 = vmatpush1.xpose.msra.mxu0 %v249
    %285 = vmatprep.subr.mxu0 0.0
    %286 = vmatpush1.xpose.msra.mxu0 %v252
    %287 = vmatprep.subr.mxu0 0.0
    %288 = vmatpush1.xpose.msra.mxu0 %v255
    %289 = vmatprep.subr.mxu0 0.0
    %290 = vmatpush1.xpose.msra.mxu0 0.0
    %291 = vmatprep.subr.mxu0 0.0
    %292 = vmatpush1.xpose.msra.mxu0 0.0
    %293 = vmatprep.subr.mxu0 0.0
    %294 = vmatpush1.xpose.msra.mxu0 0.0
    %295 = vmatprep.subr.mxu0 0.0
    %296 = vmatpush1.xpose.msra.mxu0 0.0
    %297 = vmatprep.subr.mxu0 0.0
    %298 = vmatpush1.xpose.msra.mxu0 0.0
    %299 = vmatprep.subr.mxu0 0.0
    %300 = vmatpush1.xpose.msra.mxu0 0.0
    %301 = vmatprep.subr.mxu0 0.0
    %302 = vmatpush1.xpose.msra.mxu0 0.0
    %303 = vmatprep.subr.mxu0 0.0
    %304 = vmatpush1.xpose.msra.mxu0 0.0
    %305 = vmatprep.subr.mxu0 0.0
    %306 = vmatpush1.xpose.msra.mxu0 0.0
    %307 = vmatprep.subr.mxu0 0.0
    %308 = vmatpush1.xpose.msra.mxu0 0.0
    %309 = vmatprep.subr.mxu0 0.0
    %310 = vmatpush1.xpose.msra.mxu0 0.0
    %311 = vmatprep.subr.mxu0 0.0
    %312 = vmatpush1.xpose.msra.mxu0 0.0
    %313 = vmatprep.subr.mxu0 0.0
    %314 = vmatpush1.xpose.msra.mxu0 0.0
    %315 = vmatprep.subr.mxu0 0.0
    %316 = vmatpush1.xpose.msra.mxu0 0.0
    %317 = vmatprep.subr.mxu0 0.0
    %318 = vmatpush1.xpose.msra.mxu0 0.0
    %319 = vmatprep.subr.mxu0 0.0
    %320 = vmatpush1.xpose.msra.mxu0 0.0
    %321 = vmatprep.mubr.f32.mxu0 0.0
    %322 = vmatmul.mubr.f32.gmra.mrb[0].mxu0 %v207
    %v323 = vpop.f32.mrb[0].mxu0
    %v324 = vadd.f32 0.0, %v323
    %v325 = vpop.f32.mrb[0].mxu0
    %326 = vdwg.mxu0
    %v328 = vsel %vm84, %v18, 0
    %v331 = vsel %vm84, %v52, 0
    %v334 = vsel %vm84, %v53, 0
    %v337 = vsel %vm84, %v54, 0
    %v340 = vsel %vm84, %v55, 0
    %v343 = vsel %vm84, %v56, 0
    %v346 = vsel %vm84, %v57, 0
    %v349 = vsel %vm84, %v58, 0
    %v352 = vsel %vm84, %v59, 0
    %v355 = vsel %vm84, %v60, 0
    %v358 = vsel %vm84, %v61, 0
    %v361 = vsel %vm84, %v62, 0
    %v364 = vsel %vm84, %v63, 0
    %v367 = vsel %vm84, %v64, 0
    %v370 = vsel %vm84, %v65, 0
    %v373 = vsel %vm84, %v66, 0
    %v376 = vsel %vm84, %v67, 0
    %378 = vmatprep.subr.mxu0 0.0
    %379 = vmatpush1.xpose.msra.mxu0 %v331
    %380 = vmatprep.subr.mxu0 0.0
    %381 = vmatpush1.xpose.msra.mxu0 %v334
    %382 = vmatprep.subr.mxu0 0.0
    %383 = vmatpush1.xpose.msra.mxu0 %v337
    %384 = vmatprep.subr.mxu0 0.0
    %385 = vmatpush1.xpose.msra.mxu0 %v340
    %386 = vmatprep.subr.mxu0 0.0
    %387 = vmatpush1.xpose.msra.mxu0 %v343
    %388 = vmatprep.subr.mxu0 0.0
    %389 = vmatpush1.xpose.msra.mxu0 %v346
    %390 = vmatprep.subr.mxu0 0.0
    %391 = vmatpush1.xpose.msra.mxu0 %v349
    %392 = vmatprep.subr.mxu0 0.0
    %393 = vmatpush1.xpose.msra.mxu0 %v352
    %394 = vmatprep.subr.mxu0 0.0
    %395 = vmatpush1.xpose.msra.mxu0 %v355
    %396 = vmatprep.subr.mxu0 0.0
    %397 = vmatpush1.xpose.msra.mxu0 %v358
    %398 = vmatprep.subr.mxu0 0.0
    %399 = vmatpush1.xpose.msra.mxu0 %v361
    %400 = vmatprep.subr.mxu0 0.0
    %401 = vmatpush1.xpose.msra.mxu0 %v364
    %402 = vmatprep.subr.mxu0 0.0
    %403 = vmatpush1.xpose.msra.mxu0 %v367
    %404 = vmatprep.subr.mxu0 0.0
    %405 = vmatpush1.xpose.msra.mxu0 %v370
    %406 = vmatprep.subr.mxu0 0.0
    %407 = vmatpush1.xpose.msra.mxu0 %v373
    %408 = vmatprep.subr.mxu0 0.0
    %409 = vmatpush1.xpose.msra.mxu0 %v376
    %410 = vmatprep.subr.mxu0 0.0
    %411 = vmatpush1.xpose.msra.mxu0 0.0
    %412 = vmatprep.subr.mxu0 0.0
    %413 = vmatpush1.xpose.msra.mxu0 0.0
    %414 = vmatprep.subr.mxu0 0.0
    %415 = vmatpush1.xpose.msra.mxu0 0.0
    %416 = vmatprep.subr.mxu0 0.0
    %417 = vmatpush1.xpose.msra.mxu0 0.0
    %418 = vmatprep.subr.mxu0 0.0
    %419 = vmatpush1.xpose.msra.mxu0 0.0
    %420 = vmatprep.subr.mxu0 0.0
    %421 = vmatpush1.xpose.msra.mxu0 0.0
    %422 = vmatprep.subr.mxu0 0.0
    %423 = vmatpush1.xpose.msra.mxu0 0.0
    %424 = vmatprep.subr.mxu0 0.0
    %425 = vmatpush1.xpose.msra.mxu0 0.0
    %426 = vmatprep.subr.mxu0 0.0
    %427 = vmatpush1.xpose.msra.mxu0 0.0
    %428 = vmatprep.subr.mxu0 0.0
    %429 = vmatpush1.xpose.msra.mxu0 0.0
    %430 = vmatprep.subr.mxu0 0.0
    %431 = vmatpush1.xpose.msra.mxu0 0.0
    %432 = vmatprep.subr.mxu0 0.0
    %433 = vmatpush1.xpose.msra.mxu0 0.0
    %434 = vmatprep.subr.mxu0 0.0
    %435 = vmatpush1.xpose.msra.mxu0 0.0
    %436 = vmatprep.subr.mxu0 0.0
    %437 = vmatpush1.xpose.msra.mxu0 0.0
    %438 = vmatprep.subr.mxu0 0.0
    %439 = vmatpush1.xpose.msra.mxu0 0.0
    %440 = vmatprep.subr.mxu0 0.0
    %441 = vmatpush1.xpose.msra.mxu0 0.0
    %442 = vmatprep.mubr.f32.mxu0 0.0
    %443 = vmatmul.mubr.f32.gmra.mrb[0].mxu0 %v328
    %v444 = vpop.f32.mrb[0].mxu0
    %v445 = vadd.f32 0.0, %v444
    %v446 = vpop.f32.mrb[0].mxu0
    %447 = vdwg.mxu0
    %v449 = vsel %vm84, %v19, 0
    %v452 = vsel %vm84, %v68, 0
    %v455 = vsel %vm84, %v69, 0
    %v458 = vsel %vm84, %v70, 0
    %v461 = vsel %vm84, %v71, 0
    %v464 = vsel %vm84, %v72, 0
    %v467 = vsel %vm84, %v73, 0
    %v470 = vsel %vm84, %v74, 0
    %v473 = vsel %vm84, %v75, 0
    %v476 = vsel %vm84, %v76, 0
    %v479 = vsel %vm84, %v77, 0
    %v482 = vsel %vm84, %v78, 0
    %v485 = vsel %vm84, %v79, 0
    %v488 = vsel %vm84, %v80, 0
    %v491 = vsel %vm84, %v81, 0
    %v494 = vsel %vm84, %v82, 0
    %v497 = vsel %vm84, %v83, 0
    %499 = vmatprep.subr.mxu0 0.0
    %500 = vmatpush1.xpose.msra.mxu0 %v452
    %501 = vmatprep.subr.mxu0 0.0
    %502 = vmatpush1.xpose.msra.mxu0 %v455
    %503 = vmatprep.subr.mxu0 0.0
    %504 = vmatpush1.xpose.msra.mxu0 %v458
    %505 = vmatprep.subr.mxu0 0.0
    %506 = vmatpush1.xpose.msra.mxu0 %v461
    %507 = vmatprep.subr.mxu0 0.0
    %508 = vmatpush1.xpose.msra.mxu0 %v464
    %509 = vmatprep.subr.mxu0 0.0
    %510 = vmatpush1.xpose.msra.mxu0 %v467
    %511 = vmatprep.subr.mxu0 0.0
    %512 = vmatpush1.xpose.msra.mxu0 %v470
    %513 = vmatprep.subr.mxu0 0.0
    %514 = vmatpush1.xpose.msra.mxu0 %v473
    %515 = vmatprep.subr.mxu0 0.0
    %516 = vmatpush1.xpose.msra.mxu0 %v476
    %517 = vmatprep.subr.mxu0 0.0
    %518 = vmatpush1.xpose.msra.mxu0 %v479
    %519 = vmatprep.subr.mxu0 0.0
    %520 = vmatpush1.xpose.msra.mxu0 %v482
    %521 = vmatprep.subr.mxu0 0.0
    %522 = vmatpush1.xpose.msra.mxu0 %v485
    %523 = vmatprep.subr.mxu0 0.0
    %524 = vmatpush1.xpose.msra.mxu0 %v488
    %525 = vmatprep.subr.mxu0 0.0
    %526 = vmatpush1.xpose.msra.mxu0 %v491
    %527 = vmatprep.subr.mxu0 0.0
    %528 = vmatpush1.xpose.msra.mxu0 %v494
    %529 = vmatprep.subr.mxu0 0.0
    %530 = vmatpush1.xpose.msra.mxu0 %v497
    %531 = vmatprep.subr.mxu0 0.0
    %532 = vmatpush1.xpose.msra.mxu0 0.0
    %533 = vmatprep.subr.mxu0 0.0
    %534 = vmatpush1.xpose.msra.mxu0 0.0
    %535 = vmatprep.subr.mxu0 0.0
    %536 = vmatpush1.xpose.msra.mxu0 0.0
    %537 = vmatprep.subr.mxu0 0.0
    %538 = vmatpush1.xpose.msra.mxu0 0.0
    %539 = vmatprep.subr.mxu0 0.0
    %540 = vmatpush1.xpose.msra.mxu0 0.0
    %541 = vmatprep.subr.mxu0 0.0
    %542 = vmatpush1.xpose.msra.mxu0 0.0
    %543 = vmatprep.subr.mxu0 0.0
    %544 = vmatpush1.xpose.msra.mxu0 0.0
    %545 = vmatprep.subr.mxu0 0.0
    %546 = vmatpush1.xpose.msra.mxu0 0.0
    %547 = vmatprep.subr.mxu0 0.0
    %548 = vmatpush1.xpose.msra.mxu0 0.0
    %549 = vmatprep.subr.mxu0 0.0
    %550 = vmatpush1.xpose.msra.mxu0 0.0
    %551 = vmatprep.subr.mxu0 0.0
    %552 = vmatpush1.xpose.msra.mxu0 0.0
    %553 = vmatprep.subr.mxu0 0.0
    %554 = vmatpush1.xpose.msra.mxu0 0.0
    %555 = vmatprep.subr.mxu0 0.0
    %556 = vmatpush1.xpose.msra.mxu0 0.0
    %557 = vmatprep.subr.mxu0 0.0
    %558 = vmatpush1.xpose.msra.mxu0 0.0
    %559 = vmatprep.subr.mxu0 0.0
    %560 = vmatpush1.xpose.msra.mxu0 0.0
    %561 = vmatprep.subr.mxu0 0.0
    %562 = vmatpush1.xpose.msra.mxu0 0.0
    %563 = vmatprep.mubr.f32.mxu0 0.0
    %564 = vmatmul.mubr.f32.gmra.mrb[0].mxu0 %v449
    %v565 = vpop.f32.mrb[0].mxu0
    %v566 = vadd.f32 0.0, %v565
    %v567 = vpop.f32.mrb[0].mxu0
    %568 = vdwg.mxu0
    %569 = vst [vmem:[#allocation2] sm:$0xff] %v203
    %570 = vst [vmem:[#allocation2 + $0x8] sm:$0xff] %v324
    %571 = vst [vmem:[#allocation2 + $0x10] sm:$0xff] %v445
    %572 = vst [vmem:[#allocation2 + $0x18] sm:$0xff] %v566
    // Predicated region
    $region10: #{tpu_custom_call.1} parent=1 // pred_check
      _
    $region11: #{tpu_custom_call.1} parent=1 // pred_check_branch
      %574 = sbr.rel (0) target = $region13
    $region12: #{tpu_custom_call.1} parent=1 // pred_region
      %s576 = ssub.s32 512, 512
      %577 = vsyncadd [#allocation3], %s576
      %s578 = sshll.u32 [#allocation2], 4
      %s579 = int_to_ptr.vmem [resolvable:$true] %s578
      %584 = dma.vmem_to_hbm [thread:$0]  %s579, 512, %s2, [#allocation3], 128, 128, 8
    $region13: #{tpu_custom_call.1} parent=1 // pred_fallthru
      _
    // Predicated region
    $region14: #{tpu_custom_call.1} parent=1 // pred_check
      _
    $region15: #{tpu_custom_call.1} parent=1 // pred_check_branch
      %586 = sbr.rel (0) target = $region17
    $region16: #{tpu_custom_call.1} parent=1 // pred_region
      %587 = dma.done [#allocation3], 512
    $region17: #{tpu_custom_call.1} parent=1 // pred_fallthru
      _
    %588 = vsyncpa [#allocation3], 1

</llo_original>
